<compile_context>
chip_gen: v6e
topology: v6e:2x2x1
jax: 0.10.0
libtpu: 0.0.40
codegen_flags: <defaults>
</compile_context>

<pallas_src>
import jax
import jax.numpy as jnp
from jax.experimental import pallas as pl
from jax.experimental.pallas import tpu as pltpu


LEAKY_SLOPE = 0.01                       # nn.LeakyReLU default negative_slope
VMEM_BUDGET_BYTES = 44 * 1024 * 1024     # conservative: fits v7x's 64 MiB VMEM


def _round_up(n, m):
    return ((n + m - 1) // m) * m


def _leaky_relu_f32(x):
    # Applied to the f32 MXU accumulator (no bf16 VPU path needed on v5e).
    return jnp.where(x > 0, x, LEAKY_SLOPE * x)


def vae_encoder_kernel(x_ref, w1_ref, b1_ref, w2_ref, b2_ref, o_ref):
    """One batch tile: (bb,F)@(F,H1p)+b1 -> LeakyReLU -> @(H1p,H2p)+b2 -> LeakyReLU."""
    # x arrives in its HBM dtype (f32); cast to the MXU dtype here, in VMEM,
    # instead of in a separate wrapper-side XLA pass.
    x = x_ref[...].astype(w1_ref.dtype)
    h1 = jnp.dot(x, w1_ref[...], preferred_element_type=jnp.float32)
    h1 = _leaky_relu_f32(h1 + b1_ref[...])            # f32 bias + nonlinearity
    h1 = h1.astype(w2_ref.dtype)                      # bf16 for the 2nd MXU pass
    h2 = jnp.dot(h1, w2_ref[...], preferred_element_type=jnp.float32)
    h2 = _leaky_relu_f32(h2 + b2_ref[...])
    o_ref[...] = h2.astype(o_ref.dtype)               # lane-dense (128-mult) store


def _resident_weight_bytes(F, H1p, H2p):
    # Single-buffered (pl.Buffered(1)) bf16 weights + f32 biases.
    return (F * H1p + H1p * H2p) * 2 + (H1p + H2p) * 4


def _vmem_per_row_bytes(F, H1p, H2p, x_bytes, out_bytes):
    return (2 * F * x_bytes          # double-buffered streamed x tile
            + F * 2                  # in-kernel bf16 copy of x
            + H1p * (4 + 2)          # h1 f32 accumulator + bf16 recast
            + H2p * 4                # h2 f32
            + 2 * H2p * out_bytes)   # double-buffered output tile


def _pick_block_b(B, F, H1p, H2p, x_bytes, out_bytes):
    resident = _resident_weight_bytes(F, H1p, H2p)
    per_row = _vmem_per_row_bytes(F, H1p, H2p, x_bytes, out_bytes)
    avail = VMEM_BUDGET_BYTES - resident
    if avail < 16 * per_row:
        # TODO(synk): K-tiled w1 variant needed when resident weights alone
        # blow the VMEM budget.
        raise NotImplementedError(
            "VaeEncoder Pallas kernel: resident weights exceed the VMEM budget; "
            "a K-tiled variant is required for this F.")
    # 16-row alignment (bf16 packs 16 rows per sublane group), cap at 1024.
    cap = min(1024, (avail // per_row) // 16 * 16)
    if B <= 16:
        return B                     # one full-batch tile (full-dim block is legal)
    if B <= 2 * cap:
        # Guarantee >=2 grid steps so ("parallel",) gives both v7x TCs work.
        return min(cap, max(16, _round_up(pl.cdiv(B, 2), 16)))
    return cap


def vae_encoder_forward(x, params, *, compute_dtype=jnp.bfloat16, block_b=None):
    """x: (B, H, W) float. params: dict of w1,b1,w2,b2 (f32). Returns (B, H2) f32."""
    B = x.shape[0]
    x_flat = x.reshape(B, -1)                 # free reshape; dtype untouched
    F = x_flat.shape[1]
    x_bytes = jnp.dtype(x_flat.dtype).itemsize

    w1, b1, w2, b2 = params["w1"], params["b1"], params["w2"], params["b2"]
    H1, H2 = w1.shape[1], w2.shape[1]
    H1p, H2p = _round_up(H1, 128), _round_up(H2, 128)
    out_dtype = jnp.float32
    out_bytes = jnp.dtype(out_dtype).itemsize

    # Zero-pad hidden dims to 128-lane multiples (pad columns stay exactly 0
    # through both layers: zero bias pad and LeakyReLU(0)=0). bf16 weights,
    # f32 biases.
    w1p = jnp.zeros((F, H1p), compute_dtype).at[:, :H1].set(w1.astype(compute_dtype))
    b1p = jnp.zeros((1, H1p), jnp.float32).at[:, :H1].set(b1.astype(jnp.float32))
    w2p = jnp.zeros((H1p, H2p), compute_dtype).at[:H1, :H2].set(w2.astype(compute_dtype))
    b2p = jnp.zeros((1, H2p), jnp.float32).at[:, :H2].set(b2.astype(jnp.float32))

    if block_b is None:
        block_b = _pick_block_b(B, F, H1p, H2p, x_bytes, out_bytes)
    block_b = min(block_b, B)
    nb = pl.cdiv(B, block_b)   # ragged last tile handled by Pallas edge masking

    vmem_need = (_resident_weight_bytes(F, H1p, H2p)
                 + block_b * _vmem_per_row_bytes(F, H1p, H2p, x_bytes, out_bytes))
    vmem_limit = int(min(max(vmem_need + vmem_need // 4 + (4 << 20), 32 << 20),
                         60 << 20))

    flops = 2 * B * (F * H1p + H1p * H2p)
    bytes_accessed = (B * F * x_bytes
                      + _resident_weight_bytes(F, H1p, H2p)
                      + B * H2p * out_bytes)

    grid_spec = pltpu.PrefetchScalarGridSpec(
        num_scalar_prefetch=0,
        grid=(nb,),
        in_specs=[
            # x: streamed per batch tile (double-buffered by the pipeline).
            pl.BlockSpec((block_b, F), lambda i: (i, 0)),
            # Weights / biases: constant index_map + single buffer -> DMA'd
            # once, VMEM-resident across the whole grid.
            pl.BlockSpec((F, H1p), lambda i: (0, 0), pipeline_mode=pl.Buffered(1)),
            pl.BlockSpec((1, H1p), lambda i: (0, 0), pipeline_mode=pl.Buffered(1)),
            pl.BlockSpec((H1p, H2p), lambda i: (0, 0), pipeline_mode=pl.Buffered(1)),
            pl.BlockSpec((1, H2p), lambda i: (0, 0), pipeline_mode=pl.Buffered(1)),
        ],
        out_specs=pl.BlockSpec((block_b, H2p), lambda i: (i, 0)),
    )

    out = pl.pallas_call(
        vae_encoder_kernel,
        out_shape=jax.ShapeDtypeStruct((B, H2p), out_dtype),
        grid_spec=grid_spec,
        compiler_params=pltpu.CompilerParams(
            dimension_semantics=("parallel",),   # megacore batch sharding on v7x
            vmem_limit_bytes=vmem_limit,
        ),
        cost_estimate=pl.CostEstimate(
            flops=flops, transcendentals=0, bytes_accessed=bytes_accessed),
    )(x_flat, w1p, b1p, w2p, b2p)

    return out[:, :H2]


def init_params(key, input_dimension, hidden_dimensions=(32, 32)):
    """Deterministic init mimicking nn.Linear's U(-1/sqrt(fan_in), 1/sqrt(fan_in))."""
    params = {}
    prev = input_dimension * input_dimension
    keys = jax.random.split(key, 2 * len(hidden_dimensions))
    for i, hid in enumerate(hidden_dimensions):
        bound = 1.0 / (prev ** 0.5)
        params[f"w{i + 1}"] = jax.random.uniform(
            keys[2 * i], (prev, hid), jnp.float32, minval=-bound, maxval=bound
        )
        params[f"b{i + 1}"] = jax.random.uniform(
            keys[2 * i + 1], (1, hid), jnp.float32, minval=-bound, maxval=bound
        )
        prev = hid
    return params


def reference_forward(x, params, compute_dtype=jnp.bfloat16):
    """Pure-JAX reference with the same bf16 rounding as the kernel."""
    x_flat = x.reshape(x.shape[0], -1).astype(compute_dtype)
    h1 = jnp.dot(x_flat, params["w1"].astype(compute_dtype),
                 preferred_element_type=jnp.float32) + params["b1"]
    h1 = jnp.where(h1 > 0, h1, LEAKY_SLOPE * h1).astype(compute_dtype)
    h2 = jnp.dot(h1, params["w2"].astype(compute_dtype),
                 preferred_element_type=jnp.float32) + params["b2"]
    return jnp.where(h2 > 0, h2, LEAKY_SLOPE * h2)


if __name__ == "__main__":
    # Small shapes consistent with the module: batch=2, input_dimension=16
    # (=> flattened features 256), hidden_dimensions=(32, 32), batch_norm=False.
    key = jax.random.PRNGKey(0)
    k_x, k_p = jax.random.split(key)

    input_dimension = 16
    batch = 2
    hidden_dimensions = (32, 32)

    x = jax.random.normal(k_x, (batch, input_dimension, input_dimension), jnp.float32)
    params = init_params(k_p, input_dimension, hidden_dimensions)

    out = vae_encoder_forward(x, params)
    out = jax.block_until_ready(out)

    ref = reference_forward(x, params)
    assert out.shape == (batch, hidden_dimensions[-1])
    max_err = float(jnp.max(jnp.abs(out - ref)))
    assert jnp.allclose(out, ref, atol=1e-3, rtol=1e-3), max_err

    print("KERNEL_OK")
</pallas_src>

<mosaic_0001>
module attributes {stable_mosaic.version = 11 : i64} {
  func.func @vae_encoder_kernel(%arg0: i32, %arg1: memref<2x256xf32, #tpu.memory_space<vmem>>, %arg2: memref<256x128xbf16, #tpu.memory_space<vmem>>, %arg3: memref<1x128xf32, #tpu.memory_space<vmem>>, %arg4: memref<128x128xbf16, #tpu.memory_space<vmem>>, %arg5: memref<1x128xf32, #tpu.memory_space<vmem>>, %arg6: memref<2x128xf32, #tpu.memory_space<vmem>>) attributes {dimension_semantics = [#tpu.dimension_semantics<parallel>], iteration_bounds = array<i64: 1>, scalar_prefetch = 0 : i64, scratch_operands = 0 : i64, tpu.core_type = #tpu.core_type<tc>, window_params = [{transform_indices = @transform_0, window_bounds = array<i64: 2, 256>}, {pipeline_mode = #tpu.pipeline_mode<synchronous>, transform_indices = @transform_1, window_bounds = array<i64: 256, 128>}, {pipeline_mode = #tpu.pipeline_mode<synchronous>, transform_indices = @transform_2, window_bounds = array<i64: 1, 128>}, {pipeline_mode = #tpu.pipeline_mode<synchronous>, transform_indices = @transform_3, window_bounds = array<i64: 128, 128>}, {pipeline_mode = #tpu.pipeline_mode<synchronous>, transform_indices = @transform_4, window_bounds = array<i64: 1, 128>}, {transform_indices = @transform_5, window_bounds = array<i64: 2, 128>}]} {
    %c0 = arith.constant 0 : index
    %c0_0 = arith.constant 0 : index
    %0 = vector.load %arg1[%c0, %c0_0] : memref<2x256xf32, #tpu.memory_space<vmem>>, vector<2x256xf32>
    %1 = arith.truncf %0 : vector<2x256xf32> to vector<2x256xbf16>
    %c0_1 = arith.constant 0 : index
    %c0_2 = arith.constant 0 : index
    %2 = vector.load %arg2[%c0_1, %c0_2] : memref<256x128xbf16, #tpu.memory_space<vmem>>, vector<256x128xbf16>
    %cst = arith.constant dense<0.000000e+00> : vector<2x128xf32>
    %3 = tpu.matmul %1, %2, %cst {dimension_numbers = #tpu.dot_dimension_numbers<[1], [0], [0], [1], [0, 0, 1, 1], [], []>} : vector<2x256xbf16>, vector<256x128xbf16>, vector<2x128xf32> -> vector<2x128xf32>
    %c0_3 = arith.constant 0 : index
    %c0_4 = arith.constant 0 : index
    %4 = vector.load %arg3[%c0_3, %c0_4] : memref<1x128xf32, #tpu.memory_space<vmem>>, vector<1x128xf32>
    %5 = vector.broadcast %4 : vector<1x128xf32> to vector<2x128xf32>
    %6 = arith.addf %3, %5 : vector<2x128xf32>
    %cst_5 = arith.constant 0.000000e+00 : f32
    %7 = vector.broadcast %cst_5 : f32 to vector<2x128xf32>
    %8 = arith.cmpf ogt, %6, %7 : vector<2x128xf32>
    %cst_6 = arith.constant 0.00999999977 : f32
    %9 = vector.broadcast %cst_6 : f32 to vector<2x128xf32>
    %10 = arith.mulf %9, %6 : vector<2x128xf32>
    %11 = arith.select %8, %6, %10 : vector<2x128xi1>, vector<2x128xf32>
    %12 = arith.truncf %11 : vector<2x128xf32> to vector<2x128xbf16>
    %c0_7 = arith.constant 0 : index
    %c0_8 = arith.constant 0 : index
    %13 = vector.load %arg4[%c0_7, %c0_8] : memref<128x128xbf16, #tpu.memory_space<vmem>>, vector<128x128xbf16>
    %cst_9 = arith.constant dense<0.000000e+00> : vector<2x128xf32>
    %14 = tpu.matmul %12, %13, %cst_9 {dimension_numbers = #tpu.dot_dimension_numbers<[1], [0], [0], [1], [0, 0, 1, 1], [], []>} : vector<2x128xbf16>, vector<128x128xbf16>, vector<2x128xf32> -> vector<2x128xf32>
    %c0_10 = arith.constant 0 : index
    %c0_11 = arith.constant 0 : index
    %15 = vector.load %arg5[%c0_10, %c0_11] : memref<1x128xf32, #tpu.memory_space<vmem>>, vector<1x128xf32>
    %16 = vector.broadcast %15 : vector<1x128xf32> to vector<2x128xf32>
    %17 = arith.addf %14, %16 : vector<2x128xf32>
    %cst_12 = arith.constant 0.000000e+00 : f32
    %18 = vector.broadcast %cst_12 : f32 to vector<2x128xf32>
    %19 = arith.cmpf ogt, %17, %18 : vector<2x128xf32>
    %cst_13 = arith.constant 0.00999999977 : f32
    %20 = vector.broadcast %cst_13 : f32 to vector<2x128xf32>
    %21 = arith.mulf %20, %17 : vector<2x128xf32>
    %22 = arith.select %19, %17, %21 : vector<2x128xi1>, vector<2x128xf32>
    %c0_14 = arith.constant 0 : index
    %c0_15 = arith.constant 0 : index
    %23 = vector.load %arg6[%c0_14, %c0_15] : memref<2x128xf32, #tpu.memory_space<vmem>>, vector<2x128xf32>
    tpu.vector_store %arg6[%c0_14, %c0_15], %22 {strides = array<i32>} : memref<2x128xf32, #tpu.memory_space<vmem>>, vector<2x128xf32>,
    return
  }
  func.func @transform_0(%arg0: i32) -> (i32, i32) {
    %c0_i32 = arith.constant 0 : i32
    %c0_i32_0 = arith.constant 0 : i32
    return %arg0, %c0_i32 : i32, i32
  }
  func.func @transform_1(%arg0: i32) -> (i32, i32) {
    %c0_i32 = arith.constant 0 : i32
    %c0_i32_0 = arith.constant 0 : i32
    %c0_i32_1 = arith.constant 0 : i32
    return %c0_i32, %c0_i32_0 : i32, i32
  }
  func.func @transform_2(%arg0: i32) -> (i32, i32) {
    %c0_i32 = arith.constant 0 : i32
    %c0_i32_0 = arith.constant 0 : i32
    %c0_i32_1 = arith.constant 0 : i32
    return %c0_i32, %c0_i32_0 : i32, i32
  }
  func.func @transform_3(%arg0: i32) -> (i32, i32) {
    %c0_i32 = arith.constant 0 : i32
    %c0_i32_0 = arith.constant 0 : i32
    %c0_i32_1 = arith.constant 0 : i32
    return %c0_i32, %c0_i32_0 : i32, i32
  }
  func.func @transform_4(%arg0: i32) -> (i32, i32) {
    %c0_i32 = arith.constant 0 : i32
    %c0_i32_0 = arith.constant 0 : i32
    %c0_i32_1 = arith.constant 0 : i32
    return %c0_i32, %c0_i32_0 : i32, i32
  }
  func.func @transform_5(%arg0: i32) -> (i32, i32) {
    %c0_i32 = arith.constant 0 : i32
    %c0_i32_0 = arith.constant 0 : i32
    return %arg0, %c0_i32 : i32, i32
  }
}

</mosaic_0001>

<llo_original>
// kernel: tpu_custom_call.1
$region0: #{tpu_custom_call.1}
  #allocation0 [shape = 'u32[]', space=smem, size = 0x4, offset = 0x4, fixed_abs, tag = 'smem constant byte address 0x4 - core index']
  #allocation1 [shape = 'u32[144,128]{1,0:T(1,128)}', space=vmem, size = 0x12000, scoped, tag = 'internal scratch']
  %s0 = inlined_call_operand.hbm [shape: f32[2,256], index: 0, kind: input, shape index: {}]
  %s1 = inlined_call_operand.hbm [shape: bf16[256,128], index: 1, kind: input, shape index: {}]
  %s2 = inlined_call_operand.vmem [shape: f32[1,128], index: 2, kind: input, shape index: {}]
  %s3 = inlined_call_operand.hbm [shape: bf16[128,128], index: 3, kind: input, shape index: {}]
  %s4 = inlined_call_operand.vmem [shape: f32[1,128], index: 4, kind: input, shape index: {}]
  %s5 = inlined_call_operand.hbm [shape: f32[2,128], index: 5, kind: output, shape index: {}]
  %s6 = sld [smem:[#allocation0]]
  $region42: #{tpu_custom_call.1} parent=0
    _
  %s8 = ssub.s32 1, %s6
  %s9 = scalar_select 0, %s8, %s6
  $region1: #{tpu_custom_call.1} parent=0
    #allocation2 [shape = 'u8[2048]{0}', space=vmem, size = 0x800, scoped, tag = 'input window, operand 0, single buffered']
    #allocation3 [shape = 's32[1]{0}', space=sflag, size = 0x4, scoped, tag = 'scoped memory for tpu_custom_call.1']
    #allocation4 [shape = 's32[1]{0}', space=sflag, size = 0x4, scoped, tag = 'scoped memory for tpu_custom_call.1']
    #allocation5 [shape = 'u8[65536]{0}', space=vmem, size = 0x10000, scoped, tag = 'input window, operand 1, single buffered']
    #allocation6 [shape = 's32[1]{0}', space=sflag, size = 0x4, scoped, tag = 'scoped memory for tpu_custom_call.1']
    #allocation7 [shape = 'u8[32768]{0}', space=vmem, size = 0x8000, scoped, tag = 'input window, operand 3, single buffered']
    #allocation8 [shape = 'u8[1024]{0}', space=vmem, size = 0x400, scoped, tag = 'output window, operand 0, single buffered']
    %10 = vsyncpa [#allocation3], 0
    %11 = vsyncpa [#allocation6], 0
    %12 = vsyncpa [#allocation4], 0
    // Predicated region
    $region2: #{tpu_custom_call.1} parent=1 // pred_check
      _
    $region3: #{tpu_custom_call.1} parent=1 // pred_check_branch
      %14 = sbr.rel (0) target = $region5
    $region4: #{tpu_custom_call.1} parent=1 // pred_region
      %s16 = ssub.s32 64, 64
      %17 = vsyncadd [#allocation3], %s16
      %s19 = sshll.u32 [#allocation2], 4
      %s20 = int_to_ptr.vmem [resolvable:$true] %s19
      %22 = dma.hbm_to_vmem [thread:$0]  %s0, 64, %s20, [#allocation3]
    $region5: #{tpu_custom_call.1} parent=1 // pred_fallthru
      _
    // Predicated region
    $region6: #{tpu_custom_call.1} parent=1 // pred_check
      _
    $region7: #{tpu_custom_call.1} parent=1 // pred_check_branch
      %24 = sbr.rel (0) target = $region9
    $region8: #{tpu_custom_call.1} parent=1 // pred_region
      %s26 = ssub.s32 2048, 2048
      %27 = vsyncadd [#allocation6], %s26
      %s28 = sshll.u32 [#allocation5], 4
      %s29 = int_to_ptr.vmem [resolvable:$true] %s28
      %34 = dma.hbm_to_vmem [thread:$0]  %s1, 2048, %s29, [#allocation6], 64, 64, 4
    $region9: #{tpu_custom_call.1} parent=1 // pred_fallthru
      _
    // Predicated region
    $region10: #{tpu_custom_call.1} parent=1 // pred_check
      _
    $region11: #{tpu_custom_call.1} parent=1 // pred_check_branch
      %36 = sbr.rel (0) target = $region13
    $region12: #{tpu_custom_call.1} parent=1 // pred_region
      _
    $region13: #{tpu_custom_call.1} parent=1 // pred_fallthru
      _
    // Predicated region
    $region14: #{tpu_custom_call.1} parent=1 // pred_check
      _
    $region15: #{tpu_custom_call.1} parent=1 // pred_check_branch
      %38 = sbr.rel (0) target = $region17
    $region16: #{tpu_custom_call.1} parent=1 // pred_region
      %s40 = ssub.s32 1024, 1024
      %41 = vsyncadd [#allocation6], %s40
      %s42 = sshll.u32 [#allocation7], 4
      %s43 = int_to_ptr.vmem [resolvable:$true] %s42
      %48 = dma.hbm_to_vmem [thread:$0]  %s3, 1024, %s43, [#allocation6], 64, 64, 4
    $region17: #{tpu_custom_call.1} parent=1 // pred_fallthru
      _
    // Predicated region
    $region18: #{tpu_custom_call.1} parent=1 // pred_check
      _
    $region19: #{tpu_custom_call.1} parent=1 // pred_check_branch
      %50 = sbr.rel (0) target = $region21
    $region20: #{tpu_custom_call.1} parent=1 // pred_region
      _
    $region21: #{tpu_custom_call.1} parent=1 // pred_fallthru
      _
    // Predicated region
    $region22: #{tpu_custom_call.1} parent=1 // pred_check
      _
    $region23: #{tpu_custom_call.1} parent=1 // pred_check_branch
      %52 = sbr.rel (0) target = $region25
    $region24: #{tpu_custom_call.1} parent=1 // pred_region
      %53 = dma.done [#allocation3], 64
    $region25: #{tpu_custom_call.1} parent=1 // pred_fallthru
      _
    // Predicated region
    $region26: #{tpu_custom_call.1} parent=1 // pred_check
      _
    $region27: #{tpu_custom_call.1} parent=1 // pred_check_branch
      %55 = sbr.rel (0) target = $region29
    $region28: #{tpu_custom_call.1} parent=1 // pred_region
      %56 = dma.done [#allocation6], 2048
    $region29: #{tpu_custom_call.1} parent=1 // pred_fallthru
      _
    // Predicated region
    $region30: #{tpu_custom_call.1} parent=1 // pred_check
      _
    $region31: #{tpu_custom_call.1} parent=1 // pred_check_branch
      %58 = sbr.rel (0) target = $region33
    $region32: #{tpu_custom_call.1} parent=1 // pred_region
      %59 = dma.done [#allocation6], 1024
    $region33: #{tpu_custom_call.1} parent=1 // pred_fallthru
      _
    %v61 = vld [vmem:[#allocation2] sm:$0xf]
    %v64 = vunpack.c.l.s4 1983009808
    %v65 = vunpack.c.0.s8 %v64
    %v66 = vlaneseq
    %v67 = vshrl.u32 %v66, 7
    %v68 = vsub.s32 %v65, %v67
    %v69 = vrot.slane %v61, %v68
    %v70 = vcombine.high %v69, %v69
    %v73 = vpack.c.bf16 %v69, %v69
    %v74 = vpack.c.bf16 %v70, %v70
    %v75 = vld [vmem:[#allocation5] sm:$0xf]
    %v76 = vld [vmem:[#allocation5 + $0x4] sm:$0xf]
    %v77 = vld [vmem:[#allocation5 + $0x8] sm:$0xf]
    %v78 = vld [vmem:[#allocation5 + $0xc] sm:$0xf]
    %v79 = vld [vmem:[#allocation5 + $0x10] sm:$0xf]
    %v80 = vld [vmem:[#allocation5 + $0x14] sm:$0xf]
    %v81 = vld [vmem:[#allocation5 + $0x18] sm:$0xf]
    %v82 = vld [vmem:[#allocation5 + $0x1c] sm:$0xf]
    %v83 = vld [vmem:[#allocation5 + $0x20] sm:$0xf]
    %v84 = vld [vmem:[#allocation5 + $0x24] sm:$0xf]
    %v85 = vld [vmem:[#allocation5 + $0x28] sm:$0xf]
    %v86 = vld [vmem:[#allocation5 + $0x2c] sm:$0xf]
    %v87 = vld [vmem:[#allocation5 + $0x30] sm:$0xf]
    %v88 = vld [vmem:[#allocation5 + $0x34] sm:$0xf]
    %v89 = vld [vmem:[#allocation5 + $0x38] sm:$0xf]
    %v90 = vld [vmem:[#allocation5 + $0x3c] sm:$0xf]
    %v91 = vld [vmem:[#allocation5 + $0x40] sm:$0xf]
    %v92 = vld [vmem:[#allocation5 + $0x44] sm:$0xf]
    %v93 = vld [vmem:[#allocation5 + $0x48] sm:$0xf]
    %v94 = vld [vmem:[#allocation5 + $0x4c] sm:$0xf]
    %v95 = vld [vmem:[#allocation5 + $0x50] sm:$0xf]
    %v96 = vld [vmem:[#allocation5 + $0x54] sm:$0xf]
    %v97 = vld [vmem:[#allocation5 + $0x58] sm:$0xf]
    %v98 = vld [vmem:[#allocation5 + $0x5c] sm:$0xf]
    %v99 = vld [vmem:[#allocation5 + $0x60] sm:$0xf]
    %v100 = vld [vmem:[#allocation5 + $0x64] sm:$0xf]
    %v101 = vld [vmem:[#allocation5 + $0x68] sm:$0xf]
    %v102 = vld [vmem:[#allocation5 + $0x6c] sm:$0xf]
    %v103 = vld [vmem:[#allocation5 + $0x70] sm:$0xf]
    %v104 = vld [vmem:[#allocation5 + $0x74] sm:$0xf]
    %v105 = vld [vmem:[#allocation5 + $0x78] sm:$0xf]
    %v106 = vld [vmem:[#allocation5 + $0x7c] sm:$0xf]
    %v107 = vld [vmem:[%s2] sm:$0x1]
    %v109 = vlaneseq
    %v110 = vshrl.u32 %v109, 7
    %v111 = vsub.s32 0, %v110
    %v112 = vrot.slane %v107, %v111
    %v146 = vunpack.c.l.b16 %v75
    %v147 = vunpack.c.l.b16 %v76
    %v148 = vunpack.c.l.b16 %v77
    %v149 = vunpack.c.l.b16 %v78
    %v150 = vunpack.c.l.b16 %v79
    %v151 = vunpack.c.l.b16 %v80
    %v152 = vunpack.c.l.b16 %v81
    %v153 = vunpack.c.l.b16 %v82
    %v154 = vunpack.c.l.b16 %v83
    %v155 = vunpack.c.l.b16 %v84
    %v156 = vunpack.c.l.b16 %v85
    %v157 = vunpack.c.l.b16 %v86
    %v158 = vunpack.c.l.b16 %v87
    %v159 = vunpack.c.l.b16 %v88
    %v160 = vunpack.c.l.b16 %v89
    %v161 = vunpack.c.l.b16 %v90
    %v162 = vunpack.c.l.b16 %v91
    %v163 = vunpack.c.l.b16 %v92
    %v164 = vunpack.c.l.b16 %v93
    %v165 = vunpack.c.l.b16 %v94
    %v166 = vunpack.c.l.b16 %v95
    %v167 = vunpack.c.l.b16 %v96
    %v168 = vunpack.c.l.b16 %v97
    %v169 = vunpack.c.l.b16 %v98
    %v170 = vunpack.c.l.b16 %v99
    %v171 = vunpack.c.l.b16 %v100
    %v172 = vunpack.c.l.b16 %v101
    %v173 = vunpack.c.l.b16 %v102
    %v174 = vunpack.c.l.b16 %v103
    %v175 = vunpack.c.l.b16 %v104
    %v176 = vunpack.c.l.b16 %v105
    %v177 = vunpack.c.l.b16 %v106
    %v178 = vpack.c.b16 %v147, %v146
    %v179 = vpack.c.b16 %v149, %v148
    %v180 = vpack.c.b16 %v151, %v150
    %v181 = vpack.c.b16 %v153, %v152
    %v182 = vpack.c.b16 %v155, %v154
    %v183 = vpack.c.b16 %v157, %v156
    %v184 = vpack.c.b16 %v159, %v158
    %v185 = vpack.c.b16 %v161, %v160
    %v186 = vpack.c.b16 %v163, %v162
    %v187 = vpack.c.b16 %v165, %v164
    %v188 = vpack.c.b16 %v167, %v166
    %v189 = vpack.c.b16 %v169, %v168
    %v190 = vpack.c.b16 %v171, %v170
    %v191 = vpack.c.b16 %v173, %v172
    %v192 = vpack.c.b16 %v175, %v174
    %v193 = vpack.c.b16 %v177, %v176
    %210 = vmatprep.subr.bf16.mxu0 0
    %211 = vmatpush1.bf16.msra.mxu0 %v185
    %212 = vmatprep.subr.bf16.mxu0 0
    %213 = vmatpush1.bf16.msra.mxu0 %v184
    %214 = vmatprep.subr.bf16.mxu0 0
    %215 = vmatpush1.bf16.msra.mxu0 %v183
    %216 = vmatprep.subr.bf16.mxu0 0
    %217 = vmatpush1.bf16.msra.mxu0 %v182
    %218 = vmatprep.subr.bf16.mxu0 0
    %219 = vmatpush1.bf16.msra.mxu0 %v181
    %220 = vmatprep.subr.bf16.mxu0 0
    %221 = vmatpush1.bf16.msra.mxu0 %v180
    %222 = vmatprep.subr.bf16.mxu0 0
    %223 = vmatpush1.bf16.msra.mxu0 %v179
    %224 = vmatprep.subr.bf16.mxu0 0
    %225 = vmatpush1.bf16.msra.mxu0 %v178
    %226 = vmatprep.subr.bf16.mxu0 0
    %227 = vmatpush2.bf16.msra.mxu0 %v193
    %228 = vmatprep.subr.bf16.mxu0 0
    %229 = vmatpush2.bf16.msra.mxu0 %v192
    %230 = vmatprep.subr.bf16.mxu0 0
    %231 = vmatpush2.bf16.msra.mxu0 %v191
    %232 = vmatprep.subr.bf16.mxu0 0
    %233 = vmatpush2.bf16.msra.mxu0 %v190
    %234 = vmatprep.subr.bf16.mxu0 0
    %235 = vmatpush2.bf16.msra.mxu0 %v189
    %236 = vmatprep.subr.bf16.mxu0 0
    %237 = vmatpush2.bf16.msra.mxu0 %v188
    %238 = vmatprep.subr.bf16.mxu0 0
    %239 = vmatpush2.bf16.msra.mxu0 %v187
    %240 = vmatprep.subr.bf16.mxu0 0
    %241 = vmatpush2.bf16.msra.mxu0 %v186
    %242 = vmatprep.mubr.bf16.mxu0 %v74
    %243 = vmatmul.mubr.bf16.gmra.mxu0 %v73
    %v244 = vpop.f32.mrf.mxu0
    %v245 = vadd.f32 %v112, %v244
    %v246 = vpop.f32.mrf.mxu0
    %v247 = vpop.f32.mrf.mxu0
    %v248 = vpop.f32.mrf.mxu0
    %249 = vdwg.mxu0
    %vm250 = vcmp.gt.f32.partialorder %v245, 0.0
    %v251 = vmul.f32 %v245, 0.01
    %v252 = vsel %vm250, %v245, %v251
    %v253 = vpack.c.bf16 %v252, %v252
    %v254 = vld [vmem:[#allocation7] sm:$0xf]
    %v255 = vld [vmem:[#allocation7 + $0x4] sm:$0xf]
    %v256 = vld [vmem:[#allocation7 + $0x8] sm:$0xf]
    %v257 = vld [vmem:[#allocation7 + $0xc] sm:$0xf]
    %v258 = vld [vmem:[#allocation7 + $0x10] sm:$0xf]
    %v259 = vld [vmem:[#allocation7 + $0x14] sm:$0xf]
    %v260 = vld [vmem:[#allocation7 + $0x18] sm:$0xf]
    %v261 = vld [vmem:[#allocation7 + $0x1c] sm:$0xf]
    %v262 = vld [vmem:[#allocation7 + $0x20] sm:$0xf]
    %v263 = vld [vmem:[#allocation7 + $0x24] sm:$0xf]
    %v264 = vld [vmem:[#allocation7 + $0x28] sm:$0xf]
    %v265 = vld [vmem:[#allocation7 + $0x2c] sm:$0xf]
    %v266 = vld [vmem:[#allocation7 + $0x30] sm:$0xf]
    %v267 = vld [vmem:[#allocation7 + $0x34] sm:$0xf]
    %v268 = vld [vmem:[#allocation7 + $0x38] sm:$0xf]
    %v269 = vld [vmem:[#allocation7 + $0x3c] sm:$0xf]
    %v270 = vld [vmem:[%s4] sm:$0x1]
    %v272 = vlaneseq
    %v273 = vshrl.u32 %v272, 7
    %v274 = vsub.s32 0, %v273
    %v275 = vrot.slane %v270, %v274
    %v293 = vunpack.c.l.b16 %v254
    %v294 = vunpack.c.l.b16 %v255
    %v295 = vunpack.c.l.b16 %v256
    %v296 = vunpack.c.l.b16 %v257
    %v297 = vunpack.c.l.b16 %v258
    %v298 = vunpack.c.l.b16 %v259
    %v299 = vunpack.c.l.b16 %v260
    %v300 = vunpack.c.l.b16 %v261
    %v301 = vunpack.c.l.b16 %v262
    %v302 = vunpack.c.l.b16 %v263
    %v303 = vunpack.c.l.b16 %v264
    %v304 = vunpack.c.l.b16 %v265
    %v305 = vunpack.c.l.b16 %v266
    %v306 = vunpack.c.l.b16 %v267
    %v307 = vunpack.c.l.b16 %v268
    %v308 = vunpack.c.l.b16 %v269
    %v309 = vpack.c.b16 %v294, %v293
    %v310 = vpack.c.b16 %v296, %v295
    %v311 = vpack.c.b16 %v298, %v297
    %v312 = vpack.c.b16 %v300, %v299
    %v313 = vpack.c.b16 %v302, %v301
    %v314 = vpack.c.b16 %v304, %v303
    %v315 = vpack.c.b16 %v306, %v305
    %v316 = vpack.c.b16 %v308, %v307
    %325 = vmatprep.subr.bf16.mxu0 0
    %326 = vmatpush1.bf16.msra.mxu0 %v316
    %327 = vmatprep.subr.bf16.mxu0 0
    %328 = vmatpush1.bf16.msra.mxu0 %v315
    %329 = vmatprep.subr.bf16.mxu0 0
    %330 = vmatpush1.bf16.msra.mxu0 %v314
    %331 = vmatprep.subr.bf16.mxu0 0
    %332 = vmatpush1.bf16.msra.mxu0 %v313
    %333 = vmatprep.subr.bf16.mxu0 0
    %334 = vmatpush1.bf16.msra.mxu0 %v312
    %335 = vmatprep.subr.bf16.mxu0 0
    %336 = vmatpush1.bf16.msra.mxu0 %v311
    %337 = vmatprep.subr.bf16.mxu0 0
    %338 = vmatpush1.bf16.msra.mxu0 %v310
    %339 = vmatprep.subr.bf16.mxu0 0
    %340 = vmatpush1.bf16.msra.mxu0 %v309
    %341 = vmatprep.subr.bf16.mxu0 0
    %342 = vmatpush2.bf16.msra.mxu0 0
    %343 = vmatprep.subr.bf16.mxu0 0
    %344 = vmatpush2.bf16.msra.mxu0 0
    %345 = vmatprep.subr.bf16.mxu0 0
    %346 = vmatpush2.bf16.msra.mxu0 0
    %347 = vmatprep.subr.bf16.mxu0 0
    %348 = vmatpush2.bf16.msra.mxu0 0
    %349 = vmatprep.subr.bf16.mxu0 0
    %350 = vmatpush2.bf16.msra.mxu0 0
    %351 = vmatprep.subr.bf16.mxu0 0
    %352 = vmatpush2.bf16.msra.mxu0 0
    %353 = vmatprep.subr.bf16.mxu0 0
    %354 = vmatpush2.bf16.msra.mxu0 0
    %355 = vmatprep.subr.bf16.mxu0 0
    %356 = vmatpush2.bf16.msra.mxu0 0
    %357 = vmatprep.mubr.bf16.mxu0 0
    %358 = vmatmul.mubr.bf16.gmra.mxu0 %v253
    %v359 = vpop.f32.mrf.mxu0
    %v360 = vadd.f32 %v275, %v359
    %v361 = vpop.f32.mrf.mxu0
    %v362 = vpop.f32.mrf.mxu0
    %v363 = vpop.f32.mrf.mxu0
    %364 = vdwg.mxu0
    %vm365 = vcmp.gt.f32.partialorder %v360, 0.0
    %v366 = vmul.f32 %v360, 0.01
    %v367 = vsel %vm365, %v360, %v366
    %368 = vst [vmem:[#allocation8] sm:$0x3] %v367
    // Predicated region
    $region34: #{tpu_custom_call.1} parent=1 // pred_check
      _
    $region35: #{tpu_custom_call.1} parent=1 // pred_check_branch
      %370 = sbr.rel (0) target = $region37
    $region36: #{tpu_custom_call.1} parent=1 // pred_region
      %s372 = ssub.s32 32, 32
      %373 = vsyncadd [#allocation4], %s372
      %s375 = sshll.u32 [#allocation8], 4
      %s376 = int_to_ptr.vmem [resolvable:$true] %s375
      %378 = dma.vmem_to_hbm [thread:$0]  %s376, 32, %s5, [#allocation4]
    $region37: #{tpu_custom_call.1} parent=1 // pred_fallthru
      _
    // Predicated region
    $region38: #{tpu_custom_call.1} parent=1 // pred_check
      _
    $region39: #{tpu_custom_call.1} parent=1 // pred_check_branch
      %380 = sbr.rel (0) target = $region41
    $region40: #{tpu_custom_call.1} parent=1 // pred_region
      %381 = dma.done [#allocation4], 32
    $region41: #{tpu_custom_call.1} parent=1 // pred_fallthru
      _
    %382 = vsyncpa [#allocation3], 1
    %383 = vsyncpa [#allocation6], 1
    %384 = vsyncpa [#allocation4], 1

</llo_original>
